<compile_context>
chip_gen: v5e
topology: v5e:2x2
jax: 0.10.0
libtpu: 0.0.40
codegen_flags: <defaults>
</compile_context>

<pallas_src>
import functools

import jax
import jax.numpy as jnp
import numpy as np
from jax.experimental import pallas as pl
from jax.experimental.pallas import tpu as pltpu

KH = KW = 4
EPS = 1e-5
LANE = 128      # lane width: pad last dims to a multiple of this
SUBLANE = 8     # sublane width: row-tile granularity
VMEM_LIMIT = 48 * 1024 * 1024   # headroom even on v7x's 64 MiB VMEM


def _round_up(x, m):
    return (x + m - 1) // m * m


# ----------------------------------------------------------------------------
# Pass 1: tiled matmul + per-channel sum / sum-of-squares accumulation
# ----------------------------------------------------------------------------
def _matmul_stats_kernel(p_ref, w_ref, y_ref, s_ref):
    # p_ref: (TM, K)  im2col patch tile (f32 or bf16)
    # w_ref: (K, C)   weight tile (resident across the M axis)
    # y_ref: (TM, C)  f32 pre-BN activation tile
    # s_ref: (8, C)   f32 resident accumulator; row 0 = sum(y), row 1 = sum(y*y)
    y = jnp.dot(p_ref[...], w_ref[...], preferred_element_type=jnp.float32)
    y_ref[...] = y

    @pl.when((pl.program_id(0) == 0) & (pl.program_id(1) == 0))
    def _():
        s_ref[...] = jnp.zeros_like(s_ref)

    su = jnp.sum(y, axis=0, keepdims=True)        # (1, C)
    sq = jnp.sum(y * y, axis=0, keepdims=True)    # (1, C)
    row = jax.lax.broadcasted_iota(jnp.int32, s_ref.shape, 0)
    s_ref[...] += jnp.where(row == 0, su, 0.0) + jnp.where(row == 1, sq, 0.0)


# ----------------------------------------------------------------------------
# Pass 2: folded BatchNorm affine + activation (+ optional dropout mask)
# ----------------------------------------------------------------------------
def _norm_act_kernel(y_ref, sc_ref, sh_ref, o_ref, *, negative_slope):
    z = y_ref[...] * sc_ref[...] + sh_ref[...]
    o_ref[...] = jnp.where(z >= 0.0, z, negative_slope * z)


def _norm_act_drop_kernel(y_ref, sc_ref, sh_ref, m_ref, o_ref, *, negative_slope):
    z = y_ref[...] * sc_ref[...] + sh_ref[...]
    z = jnp.where(z >= 0.0, z, negative_slope * z)
    o_ref[...] = z * m_ref[...]


# ----------------------------------------------------------------------------
# Fused two-pass driver
# ----------------------------------------------------------------------------
def _fused_block(patches, weights, gamma, beta, count, *, negative_slope,
                 dropout_mask=None, mxu_dtype=jnp.float32, tm_max=512):
    """patches: (G, M, K), weights: (G, K, C_out).  Returns (G, M, C_out) float32."""
    g, m, k = patches.shape
    c_out = weights.shape[-1]

    k_pad = _round_up(k, LANE)
    c_pad = _round_up(c_out, LANE)
    tm = min(tm_max, _round_up(m, SUBLANE))       # production: 512-2048 (v6e) / 512-1024 (v7x)
    m_pad = _round_up(m, tm)
    m_tiles = m_pad // tm

    p = jnp.pad(patches.astype(mxu_dtype), ((0, 0), (0, m_pad - m), (0, k_pad - k)))
    w = jnp.pad(weights.astype(mxu_dtype), ((0, 0), (0, k_pad - k), (0, c_pad - c_out)))

    # --- pass 1: matmul + stats accumulation (stats block resident over the grid)
    y_all, stats = pl.pallas_call(
        _matmul_stats_kernel,
        out_shape=(jax.ShapeDtypeStruct((g, m_pad, c_pad), jnp.float32),
                   jax.ShapeDtypeStruct((SUBLANE, c_pad), jnp.float32)),
        grid=(g, m_tiles),
        in_specs=[
            pl.BlockSpec((None, tm, k_pad), lambda gi, mi: (gi, mi, 0)),
            pl.BlockSpec((None, k_pad, c_pad), lambda gi, mi: (gi, 0, 0)),  # resident over M
        ],
        out_specs=(
            pl.BlockSpec((None, tm, c_pad), lambda gi, mi: (gi, mi, 0)),
            pl.BlockSpec((SUBLANE, c_pad), lambda gi, mi: (0, 0)),          # accumulator
        ),
        compiler_params=pltpu.CompilerParams(
            dimension_semantics=("arbitrary", "arbitrary"),  # stats accumulate over both axes
            vmem_limit_bytes=VMEM_LIMIT),
    )(p, w)

    # Fold BatchNorm (training-mode batch stats, biased variance, eps=1e-5) + affine
    # into one per-channel scale/shift.  Zero-padded rows/channels contribute nothing
    # to the sums, so we divide by the true element count.
    mean = stats[0] / count
    var = jnp.maximum(stats[1] / count - mean * mean, 0.0)
    gamma_p = jnp.pad(gamma.astype(jnp.float32), (0, c_pad - c_out))
    beta_p = jnp.pad(beta.astype(jnp.float32), (0, c_pad - c_out))
    scale = (gamma_p * jax.lax.rsqrt(var + EPS)).reshape(1, c_pad)
    shift = (beta_p - mean * gamma_p * jax.lax.rsqrt(var + EPS)).reshape(1, c_pad)

    # --- pass 2: elementwise normalize + activation (+ dropout), fully parallel grid
    row_spec = pl.BlockSpec((None, tm, c_pad), lambda gi, mi: (gi, mi, 0))
    vec_spec = pl.BlockSpec((1, c_pad), lambda gi, mi: (0, 0))
    cparams_par = pltpu.CompilerParams(
        dimension_semantics=("parallel", "parallel"),        # uses both TCs on v7x
        vmem_limit_bytes=VMEM_LIMIT)

    if dropout_mask is None:
        z = pl.pallas_call(
            functools.partial(_norm_act_kernel, negative_slope=negative_slope),
            out_shape=jax.ShapeDtypeStruct((g, m_pad, c_pad), jnp.float32),
            grid=(g, m_tiles),
            in_specs=[row_spec, vec_spec, vec_spec],
            out_specs=row_spec,
            compiler_params=cparams_par,
        )(y_all, scale, shift)
    else:
        mask = jnp.pad(dropout_mask.astype(jnp.float32),
                       ((0, 0), (0, m_pad - m), (0, c_pad - c_out)))
        z = pl.pallas_call(
            functools.partial(_norm_act_drop_kernel, negative_slope=negative_slope),
            out_shape=jax.ShapeDtypeStruct((g, m_pad, c_pad), jnp.float32),
            grid=(g, m_tiles),
            in_specs=[row_spec, vec_spec, vec_spec, row_spec],
            out_specs=row_spec,
            compiler_params=cparams_par,
        )(y_all, scale, shift, mask)

    return z[:, :m, :c_out]


# ----------------------------------------------------------------------------
# Layout plumbing (pure JAX): im2col for the down conv, phase decomposition for
# the transposed conv.  All matmul / BN / activation work lives in the kernels.
# ----------------------------------------------------------------------------
def _patches_weights_down(x_nchw, w_conv):
    # Conv2d(k=4, s=2, p=1, padding_mode='reflect') as one im2col matmul.
    n, c, h, w = x_nchw.shape
    oh, ow = h // 2, w // 2
    xh = jnp.transpose(x_nchw, (0, 2, 3, 1))                        # NHWC
    xp = jnp.pad(xh, ((0, 0), (1, 1), (1, 1), (0, 0)), mode="reflect")
    slabs = [xp[:, kh:kh + 2 * oh:2, kw:kw + 2 * ow:2, :]
             for kh in range(KH) for kw in range(KW)]               # each (N, OH, OW, C)
    patches = jnp.stack(slabs, axis=3).reshape(1, n * oh * ow, KH * KW * c)
    c_out = w_conv.shape[0]
    # (C_out, C_in, KH, KW) -> rows ordered (kh, kw, ci)
    w_mat = jnp.transpose(w_conv, (2, 3, 1, 0)).reshape(1, KH * KW * c, c_out)
    return patches, w_mat, (n, oh, ow)


# Transposed-conv phase taps: output parity 0 uses kernel rows/cols (3, 1),
# parity 1 uses (2, 0).  (k = o + padding - 2*i with padding = 1.)
_PHASE_TAPS = ((3, 1), (2, 0))


def _patches_weights_up(x_nchw, w_convt):
    # ConvTranspose2d(k=4, s=2, p=1) via sub-pixel phase decomposition: each of the
    # four output parity phases is a 2x2 convolution over the zero-padded input.
    n, c, h, w = x_nchw.shape
    xh = jnp.transpose(x_nchw, (0, 2, 3, 1))                        # NHWC
    xp = jnp.pad(xh, ((0, 0), (1, 1), (1, 1), (0, 0)))              # 1-pixel zero pad
    c_out = w_convt.shape[1]
    patch_list, w_list = [], []
    for py in range(2):
        for px in range(2):
            slabs = [xp[:, py + a:py + a + h, px + b:px + b + w, :]
                     for a in range(2) for b in range(2)]           # each (N, H, W, C)
            patch_list.append(jnp.stack(slabs, axis=3).reshape(n * h * w, 4 * c))
            subs = [w_convt[:, :, _PHASE_TAPS[py][a], _PHASE_TAPS[px][b]]
                    for a in range(2) for b in range(2)]            # each (C_in, C_out)
            w_list.append(jnp.stack(subs, axis=0).reshape(4 * c, c_out))
    return jnp.stack(patch_list, axis=0), jnp.stack(w_list, axis=0), (n, h, w)


# ----------------------------------------------------------------------------
# Block forward (wrapper)
# ----------------------------------------------------------------------------
def block_forward(x_nchw, params, *, down, is_dropout=False, training=True,
                  dropout_rng=None, mxu_dtype=jnp.float32, tm_max=512):
    """Forward pass of Block.  x_nchw: (N, C_in, H, W) float32 -> NCHW float32.

    BatchNorm uses training-mode batch statistics (biased variance, eps=1e-5).
    Dropout(0.5) is applied only when `is_dropout and training`; its {0, 2} mask is
    drawn from `dropout_rng` in the wrapper and fused into the normalize pass.
    params["b"] (the conv bias) is accepted but unused: a per-channel constant is
    exactly cancelled by the BatchNorm mean subtraction that follows.
    """
    if down:
        patches, weights, (n, oh, ow) = _patches_weights_down(x_nchw, params["w"])
        neg_slope = 0.2                                             # LeakyReLU(0.2)
    else:
        patches, weights, (n, h, w) = _patches_weights_up(x_nchw, params["w"])
        oh, ow = 2 * h, 2 * w
        neg_slope = 0.0                                             # ReLU

    g, m, _ = patches.shape
    c_out = weights.shape[-1]
    count = float(g * m)                                            # = N*OH*OW output pixels

    mask = None
    if is_dropout and training:
        rng = dropout_rng if dropout_rng is not None else jax.random.PRNGKey(0)
        # TODO(synk): generate the mask in-kernel with pltpu.prng_seed/prng_random_bits
        # to avoid the extra (G, M, C_out) HBM mask stream.
        mask = jax.random.bernoulli(rng, 0.5, (g, m, c_out)).astype(jnp.float32) * 2.0

    z = _fused_block(patches, weights, params["gamma"], params["beta"], count,
                     negative_slope=neg_slope, dropout_mask=mask,
                     mxu_dtype=mxu_dtype, tm_max=tm_max)            # (G, M, C_out)

    if down:
        out = z.reshape(n, oh, ow, c_out)
    else:
        # interleave the 4 parity phases: out[:, 2i+py, 2j+px, :] = phase[py, px][:, i, j, :]
        out = z.reshape(2, 2, n, h, w, c_out)
        out = jnp.transpose(out, (2, 3, 0, 4, 1, 5)).reshape(n, oh, ow, c_out)
    return jnp.transpose(out, (0, 3, 1, 2))                         # back to NCHW


# ----------------------------------------------------------------------------
# Pure-JAX reference (correctness check only)
# ----------------------------------------------------------------------------
def _bn_act_ref(y, gamma, beta, neg_slope):
    mean = y.mean(axis=(0, 2, 3), keepdims=True)
    var = ((y - mean) ** 2).mean(axis=(0, 2, 3), keepdims=True)
    z = (y - mean) / jnp.sqrt(var + EPS) * gamma[None, :, None, None] + beta[None, :, None, None]
    return jnp.where(z >= 0.0, z, neg_slope * z)


def _ref_down(x, p):
    xp = jnp.pad(x, ((0, 0), (0, 0), (1, 1), (1, 1)), mode="reflect")
    y = jax.lax.conv_general_dilated(
        xp, p["w"], window_strides=(2, 2), padding="VALID",
        dimension_numbers=("NCHW", "OIHW", "NCHW"),
        precision=jax.lax.Precision.HIGHEST)
    y = y + p["b"][None, :, None, None]
    return _bn_act_ref(y, p["gamma"], p["beta"], 0.2)


def _ref_up(x, p):
    w_oihw = jnp.transpose(p["w"], (1, 0, 2, 3))[:, :, ::-1, ::-1]
    y = jax.lax.conv_general_dilated(
        x, w_oihw, window_strides=(1, 1), padding=((2, 2), (2, 2)),
        lhs_dilation=(2, 2), dimension_numbers=("NCHW", "OIHW", "NCHW"),
        precision=jax.lax.Precision.HIGHEST)
    y = y + p["b"][None, :, None, None]
    return _bn_act_ref(y, p["gamma"], p["beta"], 0.0)


def _init_params(key, in_ch, out_ch, down):
    kw_, kb, kg, kbt = jax.random.split(key, 4)
    w_shape = (out_ch, in_ch, KH, KW) if down else (in_ch, out_ch, KH, KW)
    bound = 1.0 / np.sqrt(in_ch * KH * KW)
    return {
        "w": jax.random.uniform(kw_, w_shape, jnp.float32, -bound, bound),
        "b": jax.random.uniform(kb, (out_ch,), jnp.float32, -bound, bound),
        "gamma": 1.0 + 0.1 * jax.random.normal(kg, (out_ch,), jnp.float32),
        "beta": 0.1 * jax.random.normal(kbt, (out_ch,), jnp.float32),
    }


if __name__ == "__main__":
    key = jax.random.PRNGKey(0)
    kx1, kx2, kp1, kp2 = jax.random.split(key, 4)

    # --- down block: (2, 4, 16, 16) -> (2, 8, 8, 8), f32 MXU path
    x_down = jax.random.normal(kx1, (2, 4, 16, 16), jnp.float32)
    p_down = _init_params(kp1, 4, 8, down=True)
    out_down = jax.block_until_ready(block_forward(x_down, p_down, down=True))
    ref_down = _ref_down(x_down, p_down)
    np.testing.assert_allclose(np.asarray(out_down), np.asarray(ref_down),
                               rtol=2e-2, atol=2e-2)
    assert out_down.shape == (2, 8, 8, 8)

    # --- up block (no dropout): (2, 4, 8, 8) -> (2, 8, 16, 16), f32 MXU path
    x_up = jax.random.normal(kx2, (2, 4, 8, 8), jnp.float32)
    p_up = _init_params(kp2, 4, 8, down=False)
    out_up = jax.block_until_ready(block_forward(x_up, p_up, down=False))
    ref_up = _ref_up(x_up, p_up)
    np.testing.assert_allclose(np.asarray(out_up), np.asarray(ref_up),
                               rtol=2e-2, atol=2e-2)
    assert out_up.shape == (2, 8, 16, 16)

    # --- bf16 MXU operands (stats / normalize stay f32), looser tolerance
    out_down_bf16 = jax.block_until_ready(
        block_forward(x_down, p_down, down=True, mxu_dtype=jnp.bfloat16))
    np.testing.assert_allclose(np.asarray(out_down_bf16), np.asarray(ref_down),
                               rtol=5e-2, atol=5e-2)

    # --- training-mode Dropout(0.5) on the up block: every output element must be
    #     either 0 (dropped) or ~2x the non-dropout reference (kept), with ~50% kept.
    out_drop = jax.block_until_ready(
        block_forward(x_up, p_up, down=False, is_dropout=True, training=True,
                      dropout_rng=jax.random.PRNGKey(42)))
    od = np.asarray(out_drop)
    rf = np.asarray(ref_up)
    ok = np.isclose(od, 0.0, atol=1e-5) | np.isclose(od, 2.0 * rf, rtol=2e-2, atol=2e-2)
    assert ok.all()
    pos = rf > 1e-2
    keep_frac = float((od[pos] > 1e-6).mean())
    assert 0.3 < keep_frac < 0.7

    print("KERNEL_OK")
</pallas_src>

<mosaic_0001>
module attributes {stable_mosaic.version = 11 : i64} {
  func.func @_matmul_stats_kernel(%arg0: i32, %arg1: i32, %arg2: memref<1x128x128xf32, #tpu.memory_space<vmem>>, %arg3: memref<1x128x128xf32, #tpu.memory_space<vmem>>, %arg4: memref<1x128x128xf32, #tpu.memory_space<vmem>>, %arg5: memref<8x128xf32, #tpu.memory_space<vmem>>) attributes {dimension_semantics = [#tpu.dimension_semantics<arbitrary>, #tpu.dimension_semantics<arbitrary>], iteration_bounds = array<i64: 1, 1>, scalar_prefetch = 0 : i64, scratch_operands = 0 : i64, tpu.core_type = #tpu.core_type<tc>, window_params = [{transform_indices = @transform_0, window_bounds = array<i64: 1, 128, 128>}, {transform_indices = @transform_1, window_bounds = array<i64: 1, 128, 128>}, {transform_indices = @transform_2, window_bounds = array<i64: 1, 128, 128>}, {pipeline_mode = #tpu.pipeline_mode<synchronous>, transform_indices = @transform_3, window_bounds = array<i64: 8, 128>}]} {
    %c0 = arith.constant 0 : index
    %c0_0 = arith.constant 0 : index
    %c0_1 = arith.constant 0 : index
    %0 = vector.load %arg2[%c0, %c0_0, %c0_1] : memref<1x128x128xf32, #tpu.memory_space<vmem>>, vector<1x128x128xf32>
    %1 = vector.shape_cast %0 : vector<1x128x128xf32> to vector<128x128xf32>
    %c0_2 = arith.constant 0 : index
    %c0_3 = arith.constant 0 : index
    %c0_4 = arith.constant 0 : index
    %2 = vector.load %arg3[%c0_2, %c0_3, %c0_4] : memref<1x128x128xf32, #tpu.memory_space<vmem>>, vector<1x128x128xf32>
    %3 = vector.shape_cast %2 : vector<1x128x128xf32> to vector<128x128xf32>
    %cst = arith.constant dense<0.000000e+00> : vector<128x128xf32>
    %4 = tpu.matmul %1, %3, %cst {dimension_numbers = #tpu.dot_dimension_numbers<[1], [0], [0], [1], [0, 0, 1, 1], [], []>} : vector<128x128xf32>, vector<128x128xf32>, vector<128x128xf32> -> vector<128x128xf32>
    %c0_5 = arith.constant 0 : index
    %c0_6 = arith.constant 0 : index
    %c0_7 = arith.constant 0 : index
    %5 = vector.load %arg4[%c0_5, %c0_6, %c0_7] : memref<1x128x128xf32, #tpu.memory_space<vmem>>, vector<1x128x128xf32>
    %6 = vector.shape_cast %5 : vector<1x128x128xf32> to vector<128x128xf32>
    %7 = vector.shape_cast %4 : vector<128x128xf32> to vector<1x128x128xf32>
    tpu.vector_store %arg4[%c0_5, %c0_6, %c0_7], %7 {strides = array<i32>} : memref<1x128x128xf32, #tpu.memory_space<vmem>>, vector<1x128x128xf32>,
    %c0_i32 = arith.constant 0 : i32
    %8 = arith.cmpi eq, %arg0, %c0_i32 : i32
    %c0_i32_8 = arith.constant 0 : i32
    %9 = arith.cmpi eq, %arg1, %c0_i32_8 : i32
    %10 = arith.andi %8, %9 : i1
    %11 = arith.extui %10 : i1 to i32
    %c0_i32_9 = arith.constant 0 : i32
    %12 = arith.cmpi ne, %11, %c0_i32_9 : i32
    scf.if %12 {
      %cst_19 = arith.constant 0.000000e+00 : f32
      %35 = vector.broadcast %cst_19 : f32 to vector<8x128xf32>
      %c0_20 = arith.constant 0 : index
      %c0_21 = arith.constant 0 : index
      %36 = vector.load %arg5[%c0_20, %c0_21] : memref<8x128xf32, #tpu.memory_space<vmem>>, vector<8x128xf32>
      tpu.vector_store %arg5[%c0_20, %c0_21], %35 {strides = array<i32>} : memref<8x128xf32, #tpu.memory_space<vmem>>, vector<8x128xf32>,
    } else {
    }
    %cst_10 = arith.constant dense<0.000000e+00> : vector<128xf32>
    %13 = vector.multi_reduction <add>, %4, %cst_10 [0] : vector<128x128xf32> to vector<128xf32>
    %14 = vector.shape_cast %13 : vector<128xf32> to vector<1x128xf32>
    %15 = arith.mulf %4, %4 : vector<128x128xf32>
    %cst_11 = arith.constant dense<0.000000e+00> : vector<128xf32>
    %16 = vector.multi_reduction <add>, %15, %cst_11 [0] : vector<128x128xf32> to vector<128xf32>
    %17 = vector.shape_cast %16 : vector<128xf32> to vector<1x128xf32>
    %18 = tpu.iota {dimensions = array<i32: 0>} : vector<8x128xi32>
    %c0_12 = arith.constant 0 : index
    %c0_13 = arith.constant 0 : index
    %19 = vector.load %arg5[%c0_12, %c0_13] : memref<8x128xf32, #tpu.memory_space<vmem>>, vector<8x128xf32>
    %c0_i32_14 = arith.constant 0 : i32
    %20 = vector.broadcast %c0_i32_14 : i32 to vector<8x128xi32>
    %21 = arith.cmpi eq, %18, %20 : vector<8x128xi32>
    %cst_15 = arith.constant 0.000000e+00 : f32
    %22 = vector.shape_cast %14 : vector<1x128xf32> to vector<1x128xf32>
    %23 = vector.broadcast %22 : vector<1x128xf32> to vector<8x128xf32>
    %24 = vector.broadcast %cst_15 : f32 to vector<8x128xf32>
    %25 = arith.select %21, %23, %24 : vector<8x128xi1>, vector<8x128xf32>
    %c1_i32 = arith.constant 1 : i32
    %26 = vector.broadcast %c1_i32 : i32 to vector<8x128xi32>
    %27 = arith.cmpi eq, %18, %26 : vector<8x128xi32>
    %cst_16 = arith.constant 0.000000e+00 : f32
    %28 = vector.shape_cast %17 : vector<1x128xf32> to vector<1x128xf32>
    %29 = vector.broadcast %28 : vector<1x128xf32> to vector<8x128xf32>
    %30 = vector.broadcast %cst_16 : f32 to vector<8x128xf32>
    %31 = arith.select %27, %29, %30 : vector<8x128xi1>, vector<8x128xf32>
    %32 = arith.addf %25, %31 : vector<8x128xf32>
    %33 = arith.addf %19, %32 : vector<8x128xf32>
    %c0_17 = arith.constant 0 : index
    %c0_18 = arith.constant 0 : index
    %34 = vector.load %arg5[%c0_17, %c0_18] : memref<8x128xf32, #tpu.memory_space<vmem>>, vector<8x128xf32>
    tpu.vector_store %arg5[%c0_17, %c0_18], %33 {strides = array<i32>} : memref<8x128xf32, #tpu.memory_space<vmem>>, vector<8x128xf32>,
    return
  }
  func.func @transform_0(%arg0: i32, %arg1: i32) -> (i32, i32, i32) {
    %c0_i32 = arith.constant 0 : i32
    %c0_i32_0 = arith.constant 0 : i32
    return %arg0, %arg1, %c0_i32 : i32, i32, i32
  }
  func.func @transform_1(%arg0: i32, %arg1: i32) -> (i32, i32, i32) {
    %c0_i32 = arith.constant 0 : i32
    %c0_i32_0 = arith.constant 0 : i32
    %c0_i32_1 = arith.constant 0 : i32
    return %arg0, %c0_i32, %c0_i32_0 : i32, i32, i32
  }
  func.func @transform_2(%arg0: i32, %arg1: i32) -> (i32, i32, i32) {
    %c0_i32 = arith.constant 0 : i32
    %c0_i32_0 = arith.constant 0 : i32
    return %arg0, %arg1, %c0_i32 : i32, i32, i32
  }
  func.func @transform_3(%arg0: i32, %arg1: i32) -> (i32, i32) {
    %c0_i32 = arith.constant 0 : i32
    %c0_i32_0 = arith.constant 0 : i32
    %c0_i32_1 = arith.constant 0 : i32
    return %c0_i32, %c0_i32_0 : i32, i32
  }
}

</mosaic_0001>

<llo_original>
// kernel: tpu_custom_call.1
$region0: #{tpu_custom_call.1}
  #allocation0 [shape = 'u32[]', space=smem, size = 0x4, offset = 0x4, fixed_abs, tag = 'smem constant byte address 0x4 - core index']
  #allocation1 [shape = 'u32[72,128]{1,0:T(1,128)}', space=vmem, size = 0x9000, scoped, tag = 'internal scratch']
  %s0 = inlined_call_operand.hbm [shape: f32[1,128,128], index: 0, kind: input, shape index: {}]
  %s1 = inlined_call_operand.hbm [shape: f32[1,128,128], index: 1, kind: input, shape index: {}]
  %s2 = inlined_call_operand.hbm [shape: f32[1,128,128], index: 2, kind: output, shape index: {0}]
  %s3 = inlined_call_operand.hbm [shape: f32[8,128], index: 3, kind: output, shape index: {1}]
  %4 = xla_tuple %s2, %s3
  %s5 = sld [smem:[#allocation0]]
  $region38: #{tpu_custom_call.1} parent=0
    _
  %s7 = ssub.s32 1, %s5
  %s8 = scalar_select 0, %s7, %s5
  $region1: #{tpu_custom_call.1} parent=0
    #allocation2 [shape = 'u8[65536]{0}', space=vmem, size = 0x10000, scoped, tag = 'input window, operand 0, single buffered']
    #allocation3 [shape = 's32[1]{0}', space=sflag, size = 0x4, scoped, tag = 'scoped memory for tpu_custom_call.1']
    #allocation4 [shape = 's32[1]{0}', space=sflag, size = 0x4, scoped, tag = 'scoped memory for tpu_custom_call.1']
    #allocation5 [shape = 'u8[65536]{0}', space=vmem, size = 0x10000, scoped, tag = 'input window, operand 1, single buffered']
    #allocation6 [shape = 's32[1]{0}', space=sflag, size = 0x4, scoped, tag = 'scoped memory for tpu_custom_call.1']
    #allocation7 [shape = 'u8[65536]{0}', space=vmem, size = 0x10000, scoped, tag = 'output window, operand 0, single buffered']
    #allocation8 [shape = 'u8[4096]{0}', space=vmem, size = 0x1000, scoped, tag = 'output window, operand 1, single buffered']
    #allocation9 [shape = 's32[1]{0}', space=sflag, size = 0x4, scoped, tag = 'scoped memory for tpu_custom_call.1']
    %9 = vsyncpa [#allocation3], 0
    %10 = vsyncpa [#allocation6], 0
    %11 = vsyncpa [#allocation4], 0
    %12 = vsyncpa [#allocation9], 0
    // Predicated region
    $region2: #{tpu_custom_call.1} parent=1 // pred_check
      _
    $region3: #{tpu_custom_call.1} parent=1 // pred_check_branch
      %14 = sbr.rel (0) target = $region5
    $region4: #{tpu_custom_call.1} parent=1 // pred_region
      %16 = vsyncadd [#allocation3], 0
      %s17 = sshll.u32 %s0, 4
      %s18 = int_to_ptr.hbm [resolvable:$true] %s17
      %s19 = sshll.u32 [#allocation2], 4
      %s20 = int_to_ptr.vmem [resolvable:$true] %s19
      %25 = dma.hbm_to_vmem [thread:$0]  %s18, 2048, %s20, [#allocation3], 128, 128, 8
    $region5: #{tpu_custom_call.1} parent=1 // pred_fallthru
      _
    // Predicated region
    $region6: #{tpu_custom_call.1} parent=1 // pred_check
      _
    $region7: #{tpu_custom_call.1} parent=1 // pred_check_branch
      %27 = sbr.rel (0) target = $region9
    $region8: #{tpu_custom_call.1} parent=1 // pred_region
      %29 = vsyncadd [#allocation6], 0
      %s30 = sshll.u32 %s1, 4
      %s31 = int_to_ptr.hbm [resolvable:$true] %s30
      %s32 = sshll.u32 [#allocation5], 4
      %s33 = int_to_ptr.vmem [resolvable:$true] %s32
      %38 = dma.hbm_to_vmem [thread:$0]  %s31, 2048, %s33, [#allocation6], 128, 128, 8
    $region9: #{tpu_custom_call.1} parent=1 // pred_fallthru
      _
    // Predicated region
    $region10: #{tpu_custom_call.1} parent=1 // pred_check
      _
    $region11: #{tpu_custom_call.1} parent=1 // pred_check_branch
      %40 = sbr.rel (0) target = $region13
    $region12: #{tpu_custom_call.1} parent=1 // pred_region
      %42 = dma.done [#allocation3], 2048
    $region13: #{tpu_custom_call.1} parent=1 // pred_fallthru
      _
    // Predicated region
    $region14: #{tpu_custom_call.1} parent=1 // pred_check
      _
    $region15: #{tpu_custom_call.1} parent=1 // pred_check_branch
      %44 = sbr.rel (0) target = $region17
    $region16: #{tpu_custom_call.1} parent=1 // pred_region
      %46 = dma.done [#allocation6], 2048
    $region17: #{tpu_custom_call.1} parent=1 // pred_fallthru
      _
    %v47 = vld [vmem:[#allocation2] sm:$0xff]
    %v48 = vld [vmem:[#allocation2 + $0x8] sm:$0xff]
    %v49 = vld [vmem:[#allocation2 + $0x10] sm:$0xff]
    %v50 = vld [vmem:[#allocation2 + $0x18] sm:$0xff]
    %v51 = vld [vmem:[#allocation2 + $0x20] sm:$0xff]
    %v52 = vld [vmem:[#allocation2 + $0x28] sm:$0xff]
    %v53 = vld [vmem:[#allocation2 + $0x30] sm:$0xff]
    %v54 = vld [vmem:[#allocation2 + $0x38] sm:$0xff]
    %v55 = vld [vmem:[#allocation2 + $0x40] sm:$0xff]
    %v56 = vld [vmem:[#allocation2 + $0x48] sm:$0xff]
    %v57 = vld [vmem:[#allocation2 + $0x50] sm:$0xff]
    %v58 = vld [vmem:[#allocation2 + $0x58] sm:$0xff]
    %v59 = vld [vmem:[#allocation2 + $0x60] sm:$0xff]
    %v60 = vld [vmem:[#allocation2 + $0x68] sm:$0xff]
    %v61 = vld [vmem:[#allocation2 + $0x70] sm:$0xff]
    %v62 = vld [vmem:[#allocation2 + $0x78] sm:$0xff]
    %v63 = vld [vmem:[#allocation5] sm:$0xff]
    %v64 = vld [vmem:[#allocation5 + $0x8] sm:$0xff]
    %v65 = vld [vmem:[#allocation5 + $0x10] sm:$0xff]
    %v66 = vld [vmem:[#allocation5 + $0x18] sm:$0xff]
    %v67 = vld [vmem:[#allocation5 + $0x20] sm:$0xff]
    %v68 = vld [vmem:[#allocation5 + $0x28] sm:$0xff]
    %v69 = vld [vmem:[#allocation5 + $0x30] sm:$0xff]
    %v70 = vld [vmem:[#allocation5 + $0x38] sm:$0xff]
    %v71 = vld [vmem:[#allocation5 + $0x40] sm:$0xff]
    %v72 = vld [vmem:[#allocation5 + $0x48] sm:$0xff]
    %v73 = vld [vmem:[#allocation5 + $0x50] sm:$0xff]
    %v74 = vld [vmem:[#allocation5 + $0x58] sm:$0xff]
    %v75 = vld [vmem:[#allocation5 + $0x60] sm:$0xff]
    %v76 = vld [vmem:[#allocation5 + $0x68] sm:$0xff]
    %v77 = vld [vmem:[#allocation5 + $0x70] sm:$0xff]
    %v78 = vld [vmem:[#allocation5 + $0x78] sm:$0xff]
    %79 = vmatpush.msra.mxu0 %v78
    %80 = vmatpush.msra.mxu0 %v77
    %81 = vmatpush.msra.mxu0 %v76
    %82 = vmatpush.msra.mxu0 %v75
    %83 = vmatpush.msra.mxu0 %v74
    %84 = vmatpush.msra.mxu0 %v73
    %85 = vmatpush.msra.mxu0 %v72
    %86 = vmatpush.msra.mxu0 %v71
    %87 = vmatpush.msra.mxu0 %v70
    %88 = vmatpush.msra.mxu0 %v69
    %89 = vmatpush.msra.mxu0 %v68
    %90 = vmatpush.msra.mxu0 %v67
    %91 = vmatpush.msra.mxu0 %v66
    %92 = vmatpush.msra.mxu0 %v65
    %93 = vmatpush.msra.mxu0 %v64
    %94 = vmatpush.msra.mxu0 %v63
    %95 = vmatmul.f32.gmra.mxu0 %v47
    %v96 = vpop.f32.mrf.mxu0
    %v97 = vadd.f32 0.0, %v96
    %98 = vmatmul.f32.gmra.mxu0 %v48
    %v99 = vpop.f32.mrf.mxu0
    %v100 = vadd.f32 0.0, %v99
    %101 = vmatmul.f32.gmra.mxu0 %v49
    %v102 = vpop.f32.mrf.mxu0
    %v103 = vadd.f32 0.0, %v102
    %104 = vmatmul.f32.gmra.mxu0 %v50
    %v105 = vpop.f32.mrf.mxu0
    %v106 = vadd.f32 0.0, %v105
    %107 = vmatmul.f32.gmra.mxu0 %v51
    %v108 = vpop.f32.mrf.mxu0
    %v109 = vadd.f32 0.0, %v108
    %110 = vmatmul.f32.gmra.mxu0 %v52
    %v111 = vpop.f32.mrf.mxu0
    %v112 = vadd.f32 0.0, %v111
    %113 = vmatmul.f32.gmra.mxu0 %v53
    %v114 = vpop.f32.mrf.mxu0
    %v115 = vadd.f32 0.0, %v114
    %116 = vmatmul.f32.gmra.mxu0 %v54
    %v117 = vpop.f32.mrf.mxu0
    %v118 = vadd.f32 0.0, %v117
    %119 = vmatmul.f32.gmra.mxu0 %v55
    %v120 = vpop.f32.mrf.mxu0
    %v121 = vadd.f32 0.0, %v120
    %122 = vmatmul.f32.gmra.mxu0 %v56
    %v123 = vpop.f32.mrf.mxu0
    %v124 = vadd.f32 0.0, %v123
    %125 = vmatmul.f32.gmra.mxu0 %v57
    %v126 = vpop.f32.mrf.mxu0
    %v127 = vadd.f32 0.0, %v126
    %128 = vmatmul.f32.gmra.mxu0 %v58
    %v129 = vpop.f32.mrf.mxu0
    %v130 = vadd.f32 0.0, %v129
    %131 = vmatmul.f32.gmra.mxu0 %v59
    %v132 = vpop.f32.mrf.mxu0
    %v133 = vadd.f32 0.0, %v132
    %134 = vmatmul.f32.gmra.mxu0 %v60
    %v135 = vpop.f32.mrf.mxu0
    %v136 = vadd.f32 0.0, %v135
    %137 = vmatmul.f32.gmra.mxu0 %v61
    %v138 = vpop.f32.mrf.mxu0
    %v139 = vadd.f32 0.0, %v138
    %140 = vmatmul.f32.gmra.mxu0 %v62
    %v141 = vpop.f32.mrf.mxu0
    %v142 = vadd.f32 0.0, %v141
    %143 = vdwg.mxu0
    %144 = vst [vmem:[#allocation7] sm:$0xff] %v97
    %145 = vst [vmem:[#allocation7 + $0x8] sm:$0xff] %v100
    %146 = vst [vmem:[#allocation7 + $0x10] sm:$0xff] %v103
    %147 = vst [vmem:[#allocation7 + $0x18] sm:$0xff] %v106
    %148 = vst [vmem:[#allocation7 + $0x20] sm:$0xff] %v109
    %149 = vst [vmem:[#allocation7 + $0x28] sm:$0xff] %v112
    %150 = vst [vmem:[#allocation7 + $0x30] sm:$0xff] %v115
    %151 = vst [vmem:[#allocation7 + $0x38] sm:$0xff] %v118
    %152 = vst [vmem:[#allocation7 + $0x40] sm:$0xff] %v121
    %153 = vst [vmem:[#allocation7 + $0x48] sm:$0xff] %v124
    %154 = vst [vmem:[#allocation7 + $0x50] sm:$0xff] %v127
    %155 = vst [vmem:[#allocation7 + $0x58] sm:$0xff] %v130
    %156 = vst [vmem:[#allocation7 + $0x60] sm:$0xff] %v133
    %157 = vst [vmem:[#allocation7 + $0x68] sm:$0xff] %v136
    %158 = vst [vmem:[#allocation7 + $0x70] sm:$0xff] %v139
    %159 = vst [vmem:[#allocation7 + $0x78] sm:$0xff] %v142
    %p160 = scmp.eq.s32.totalorder 0, 0
    %p161 = scmp.eq.s32.totalorder 0, 0
    %p162 = pnand %p160, %p161
    %p163 = pneg %p162
    // Predicated region
    $region18: #{tpu_custom_call.1} parent=1 // pred_check
      _
    $region19: #{tpu_custom_call.1} parent=1 // pred_check_branch
      %165 = sbr.rel (%p162) target = $region21
    $region20: #{tpu_custom_call.1} parent=1 // pred_region
      %166 = vst [vmem:[#allocation8] sm:$0xff] 0.0
    $region21: #{tpu_custom_call.1} parent=1 // pred_fallthru
      _
    %v167 = vadd.f32 %v97, %v100
    %v168 = vadd.f32 %v167, %v103
    %v169 = vadd.f32 %v168, %v106
    %v170 = vadd.f32 %v169, %v109
    %v171 = vadd.f32 %v170, %v112
    %v172 = vadd.f32 %v171, %v115
    %v173 = vadd.f32 %v172, %v118
    %v174 = vadd.f32 %v173, %v121
    %v175 = vadd.f32 %v174, %v124
    %v176 = vadd.f32 %v175, %v127
    %v177 = vadd.f32 %v176, %v130
    %v178 = vadd.f32 %v177, %v133
    %v179 = vadd.f32 %v178, %v136
    %v180 = vadd.f32 %v179, %v139
    %v181 = vadd.f32 %v180, %v142
    %v182 = vrot.slane %v181, 4
    %v183 = vadd.f32 %v181, %v182
    %v184 = vrot.slane %v183, 2
    %v185 = vadd.f32 %v183, %v184
    %v186 = vrot.slane %v185, 1
    %v187 = vadd.f32 %v185, %v186
    %v188 = vmul.f32 %v97, %v97
    %v189 = vmul.f32 %v100, %v100
    %v190 = vmul.f32 %v103, %v103
    %v191 = vmul.f32 %v106, %v106
    %v192 = vmul.f32 %v109, %v109
    %v193 = vmul.f32 %v112, %v112
    %v194 = vmul.f32 %v115, %v115
    %v195 = vmul.f32 %v118, %v118
    %v196 = vmul.f32 %v121, %v121
    %v197 = vmul.f32 %v124, %v124
    %v198 = vmul.f32 %v127, %v127
    %v199 = vmul.f32 %v130, %v130
    %v200 = vmul.f32 %v133, %v133
    %v201 = vmul.f32 %v136, %v136
    %v202 = vmul.f32 %v139, %v139
    %v203 = vmul.f32 %v142, %v142
    %v204 = vadd.f32 %v188, %v189
    %v205 = vadd.f32 %v204, %v190
    %v206 = vadd.f32 %v205, %v191
    %v207 = vadd.f32 %v206, %v192
    %v208 = vadd.f32 %v207, %v193
    %v209 = vadd.f32 %v208, %v194
    %v210 = vadd.f32 %v209, %v195
    %v211 = vadd.f32 %v210, %v196
    %v212 = vadd.f32 %v211, %v197
    %v213 = vadd.f32 %v212, %v198
    %v214 = vadd.f32 %v213, %v199
    %v215 = vadd.f32 %v214, %v200
    %v216 = vadd.f32 %v215, %v201
    %v217 = vadd.f32 %v216, %v202
    %v218 = vadd.f32 %v217, %v203
    %v219 = vrot.slane %v218, 4
    %v220 = vadd.f32 %v218, %v219
    %v221 = vrot.slane %v220, 2
    %v222 = vadd.f32 %v220, %v221
    %v223 = vrot.slane %v222, 1
    %v224 = vadd.f32 %v222, %v223
    %v225 = vlaneseq
    %v226 = vshrl.u32 %v225, 7
    %v227 = vld [vmem:[#allocation8] sm:$0xff]
    %vm228 = vcmp.eq.s32.totalorder %v226, 0
    %v229 = vsel %vm228, %v187, 0.0
    %vm230 = vcmp.eq.s32.totalorder %v226, 1
    %v231 = vsel %vm230, %v224, 0.0
    %v232 = vadd.f32 %v229, %v231
    %v233 = vadd.f32 %v227, %v232
    %234 = vst [vmem:[#allocation8] sm:$0xff] %v233
    // Predicated region
    $region22: #{tpu_custom_call.1} parent=1 // pred_check
      _
    $region23: #{tpu_custom_call.1} parent=1 // pred_check_branch
      %236 = sbr.rel (0) target = $region25
    $region24: #{tpu_custom_call.1} parent=1 // pred_region
      %238 = vsyncadd [#allocation4], 0
      %s239 = sshll.u32 [#allocation7], 4
      %s240 = int_to_ptr.vmem [resolvable:$true] %s239
      %s241 = sshll.u32 %s2, 4
      %s242 = int_to_ptr.hbm [resolvable:$true] %s241
      %247 = dma.vmem_to_hbm [thread:$0]  %s240, 2048, %s242, [#allocation4], 128, 128, 8
    $region25: #{tpu_custom_call.1} parent=1 // pred_fallthru
      _
    // Predicated region
    $region26: #{tpu_custom_call.1} parent=1 // pred_check
      _
    $region27: #{tpu_custom_call.1} parent=1 // pred_check_branch
      %249 = sbr.rel (0) target = $region29
    $region28: #{tpu_custom_call.1} parent=1 // pred_region
      %251 = vsyncadd [#allocation9], 0
      %s253 = sshll.u32 [#allocation8], 4
      %s254 = int_to_ptr.vmem [resolvable:$true] %s253
      %s255 = sshll.u32 %s3, 4
      %s256 = int_to_ptr.hbm [resolvable:$true] %s255
      %258 = dma.vmem_to_hbm [thread:$0]  %s254, 128, %s256, [#allocation9]
    $region29: #{tpu_custom_call.1} parent=1 // pred_fallthru
      _
    // Predicated region
    $region30: #{tpu_custom_call.1} parent=1 // pred_check
      _
    $region31: #{tpu_custom_call.1} parent=1 // pred_check_branch
      %260 = sbr.rel (0) target = $region33
    $region32: #{tpu_custom_call.1} parent=1 // pred_region
      %262 = dma.done [#allocation4], 2048
    $region33: #{tpu_custom_call.1} parent=1 // pred_fallthru
      _
    // Predicated region
    $region34: #{tpu_custom_call.1} parent=1 // pred_check
      _
    $region35: #{tpu_custom_call.1} parent=1 // pred_check_branch
      %264 = sbr.rel (0) target = $region37
    $region36: #{tpu_custom_call.1} parent=1 // pred_region
      %266 = dma.done [#allocation9], 128
    $region37: #{tpu_custom_call.1} parent=1 // pred_fallthru
      _
    %267 = vsyncpa [#allocation3], 1
    %268 = vsyncpa [#allocation6], 1
    %269 = vsyncpa [#allocation4], 1
    %270 = vsyncpa [#allocation9], 1

</llo_original>
